<compile_context>
chip_gen: v6e
topology: v6e:2x2x1
jax: 0.10.0
libtpu: 0.0.40
codegen_flags: <defaults>
</compile_context>

<pallas_src>
import jax
import jax.numpy as jnp
from jax.experimental import pallas as pl
from jax.experimental.pallas import tpu as pltpu

IN_DIM = 28 * 28   # 784, flattened MNIST
FEAT = 100         # backbone feature dim (dim_in for 'mlp')
HID_PAD = 128      # lane-dense padded feature dim


def _round_up(x, m):
    return ((x + m - 1) // m) * m


def _mlp_siamese_kernel(x1_ref, x2_ref, w1_ref, b1_ref, w2_ref, b2_ref, o_ref):
    """Fused 2-layer MLP feature extractor for both views on one batch tile.

    x1_ref, x2_ref : (TB, 784)   f32 or bf16 (batch-tiled, pipelined)
    w1_ref         : (784, 128)  bf16        (VMEM-resident across all tiles)
    b1_ref         : (1, 128)    f32
    w2_ref         : (128, 128)  bf16
    b2_ref         : (1, 128)    f32
    o_ref          : (2, TB, 128) bf16       (lane-dense; view index leading)
    """
    w1 = w1_ref[...]
    b1 = b1_ref[...]
    w2 = w2_ref[...]
    b2 = b2_ref[...]

    def features(x_ref, view):
        # Cast to bf16 in-register right before the MXU (no HBM round trip).
        x = x_ref[...].astype(jnp.bfloat16)
        h = jnp.dot(x, w1, preferred_element_type=jnp.float32)
        h = jnp.maximum(h + b1, 0.0)
        z = jnp.dot(h.astype(jnp.bfloat16), w2,
                    preferred_element_type=jnp.float32)
        z = jnp.maximum(z + b2, 0.0)
        o_ref[view, ...] = z.astype(o_ref.dtype)

    features(x1_ref, 0)
    features(x2_ref, 1)


def forward(x1, x2, padded_params, *, tile_b=None):
    """ModifiedContinualModel.forward(x1, x2): siamese feature extraction.

    x1, x2: NCHW tensors (B, 1, 28, 28). Returns (2*B, 100) features
    (features of x1 stacked over features of x2), computed in a single
    pallas_call that streams both views through the shared backbone weights.
    """
    w1p, b1p, w2p, b2p = padded_params
    B = x1.shape[0]
    x1f = x1.reshape(B, -1)   # row-major == torch .view
    x2f = x2.reshape(B, -1)

    # --- batch tiling -------------------------------------------------------
    b16 = _round_up(max(B, 1), 16)            # dense bf16 sublane packing
    if tile_b is None:
        tile_b = 512 if b16 >= 2048 else 256  # bigger tile only at large B
    tb = min(tile_b, b16)
    if b16 >= 32:
        # Cap the tile so the grid has >= 2 steps: enables DMA/compute overlap
        # everywhere and lets v7x shard the "parallel" axis across both TCs.
        tb = min(tb, _round_up(pl.cdiv(b16, 2), 16))
    b_pad = _round_up(b16, tb)                # pad waste bounded to < one tile
    n_tiles = b_pad // tb

    if b_pad != B:
        # Padding unavoidable: fuse cast+pad into one bf16 pass (cheapest copy).
        x1p = jnp.pad(x1f.astype(jnp.bfloat16), ((0, b_pad - B), (0, 0)))
        x2p = jnp.pad(x2f.astype(jnp.bfloat16), ((0, b_pad - B), (0, 0)))
    else:
        # Tile-aligned batch: stream f32 x directly, cast in-register in-kernel.
        x1p, x2p = x1f, x2f

    x_bytes = jnp.dtype(x1p.dtype).itemsize
    cost = pl.CostEstimate(
        flops=2 * 2 * b_pad * (IN_DIM * HID_PAD + HID_PAD * HID_PAD),
        transcendentals=0,
        bytes_accessed=(2 * b_pad * IN_DIM * x_bytes      # x1 + x2
                        + IN_DIM * HID_PAD * 2            # w1 (bf16)
                        + HID_PAD * HID_PAD * 2           # w2 (bf16)
                        + 2 * HID_PAD * 4                 # biases (f32)
                        + 2 * b_pad * HID_PAD * 2))       # out (bf16)

    out = pl.pallas_call(
        _mlp_siamese_kernel,
        out_shape=jax.ShapeDtypeStruct((2, b_pad, HID_PAD), jnp.bfloat16),
        grid_spec=pl.GridSpec(
            grid=(n_tiles,),
            in_specs=[
                pl.BlockSpec((tb, IN_DIM), lambda i: (i, 0)),        # x1 tile
                pl.BlockSpec((tb, IN_DIM), lambda i: (i, 0)),        # x2 tile
                pl.BlockSpec((IN_DIM, HID_PAD), lambda i: (0, 0)),   # w1 resident
                pl.BlockSpec((1, HID_PAD), lambda i: (0, 0)),        # b1
                pl.BlockSpec((HID_PAD, HID_PAD), lambda i: (0, 0)),  # w2
                pl.BlockSpec((1, HID_PAD), lambda i: (0, 0)),        # b2
            ],
            out_specs=pl.BlockSpec((2, tb, HID_PAD), lambda i: (0, i, 0)),
        ),
        compiler_params=pltpu.CompilerParams(
            dimension_semantics=("parallel",)),   # batch tiles across TCs (v7x)
        cost_estimate=cost,
    )(x1p, x2p, w1p, b1p, w2p, b2p)

    # Single fused slice+reshape at the very end (lane-dense slab kept until now).
    # (2, B, FEAT) -> (2B, FEAT): view-1 features stacked over view-2 features.
    return out[:, :B, :FEAT].reshape(2 * B, FEAT)


def init_params(key):
    """PyTorch nn.Linear default init (uniform +-1/sqrt(fan_in)), unpadded f32."""
    k1, k2, k3, k4 = jax.random.split(key, 4)
    bound1 = 1.0 / jnp.sqrt(IN_DIM)
    bound2 = 1.0 / jnp.sqrt(FEAT)
    w1 = jax.random.uniform(k1, (IN_DIM, FEAT), jnp.float32, -bound1, bound1)
    b1 = jax.random.uniform(k2, (1, FEAT), jnp.float32, -bound1, bound1)
    w2 = jax.random.uniform(k3, (FEAT, FEAT), jnp.float32, -bound2, bound2)
    b2 = jax.random.uniform(k4, (1, FEAT), jnp.float32, -bound2, bound2)
    return (w1, b1, w2, b2)


def pad_params(params):
    """Zero-pad feature dims 100 -> 128; weights to bf16, biases stay f32.

    Zero-padded W1 columns + zero b1 lanes stay 0 through ReLU, and the matching
    zero rows of W2 contribute nothing, so lanes [:100] are exact (up to bf16
    rounding of the real entries)."""
    w1, b1, w2, b2 = params
    pad = HID_PAD - FEAT
    w1p = jnp.pad(w1, ((0, 0), (0, pad))).astype(jnp.bfloat16)
    b1p = jnp.pad(b1, ((0, 0), (0, pad)))                       # f32
    w2p = jnp.pad(w2, ((0, pad), (0, pad))).astype(jnp.bfloat16)
    b2p = jnp.pad(b2, ((0, 0), (0, pad)))                       # f32
    return (w1p, b1p, w2p, b2p)


if __name__ == "__main__":
    key = jax.random.PRNGKey(0)
    kp, kx1, kx2 = jax.random.split(key, 3)

    params = init_params(kp)
    padded_params = pad_params(params)

    B = 2
    x1 = jax.random.normal(kx1, (B, 1, 28, 28), jnp.float32)  # NCHW
    x2 = jax.random.normal(kx2, (B, 1, 28, 28), jnp.float32)  # NCHW

    feats = forward(x1, x2, padded_params)
    feats = jax.block_until_ready(feats)

    # Pure-JAX f32 reference (bf16 weights/activations in the kernel loosen tol).
    w1, b1, w2, b2 = params
    xf = jnp.concatenate([x1, x2], axis=0).reshape(2 * B, -1)
    ref = jnp.maximum(jnp.maximum(xf @ w1 + b1, 0.0) @ w2 + b2, 0.0)

    assert feats.shape == (2 * B, FEAT)
    assert jnp.allclose(feats.astype(jnp.float32), ref, atol=5e-2, rtol=5e-2)

    # Sanity-check a batch that exercises multi-tile + padded-batch paths.
    B2 = 40
    y1 = jax.random.normal(kx1, (B2, 1, 28, 28), jnp.float32)
    y2 = jax.random.normal(kx2, (B2, 1, 28, 28), jnp.float32)
    feats2 = jax.block_until_ready(forward(y1, y2, padded_params))
    yf = jnp.concatenate([y1, y2], axis=0).reshape(2 * B2, -1)
    ref2 = jnp.maximum(jnp.maximum(yf @ w1 + b1, 0.0) @ w2 + b2, 0.0)
    assert feats2.shape == (2 * B2, FEAT)
    assert jnp.allclose(feats2.astype(jnp.float32), ref2, atol=5e-2, rtol=5e-2)

    # TODO(synk): observe()/loss/optimizer (Adam/SGD), Buffer, and scheduler are
    # training-time machinery with no forward-pass Pallas equivalent; not implemented.
    print("KERNEL_OK")
</pallas_src>

<mosaic_0001>
module attributes {stable_mosaic.version = 11 : i64} {
  func.func @_mlp_siamese_kernel(%arg0: i32, %arg1: memref<16x784xbf16, #tpu.memory_space<vmem>>, %arg2: memref<16x784xbf16, #tpu.memory_space<vmem>>, %arg3: memref<784x128xbf16, #tpu.memory_space<vmem>>, %arg4: memref<1x128xf32, #tpu.memory_space<vmem>>, %arg5: memref<128x128xbf16, #tpu.memory_space<vmem>>, %arg6: memref<1x128xf32, #tpu.memory_space<vmem>>, %arg7: memref<2x16x128xbf16, #tpu.memory_space<vmem>>) attributes {dimension_semantics = [#tpu.dimension_semantics<parallel>], iteration_bounds = array<i64: 1>, scalar_prefetch = 0 : i64, scratch_operands = 0 : i64, tpu.core_type = #tpu.core_type<tc>, window_params = [{transform_indices = @transform_0, window_bounds = array<i64: 16, 784>}, {transform_indices = @transform_1, window_bounds = array<i64: 16, 784>}, {pipeline_mode = #tpu.pipeline_mode<synchronous>, transform_indices = @transform_2, window_bounds = array<i64: 784, 128>}, {pipeline_mode = #tpu.pipeline_mode<synchronous>, transform_indices = @transform_3, window_bounds = array<i64: 1, 128>}, {pipeline_mode = #tpu.pipeline_mode<synchronous>, transform_indices = @transform_4, window_bounds = array<i64: 128, 128>}, {pipeline_mode = #tpu.pipeline_mode<synchronous>, transform_indices = @transform_5, window_bounds = array<i64: 1, 128>}, {transform_indices = @transform_6, window_bounds = array<i64: 2, 16, 128>}]} {
    %c0 = arith.constant 0 : index
    %c0_0 = arith.constant 0 : index
    %0 = vector.load %arg3[%c0, %c0_0] : memref<784x128xbf16, #tpu.memory_space<vmem>>, vector<784x128xbf16>
    %c0_1 = arith.constant 0 : index
    %c0_2 = arith.constant 0 : index
    %1 = vector.load %arg4[%c0_1, %c0_2] : memref<1x128xf32, #tpu.memory_space<vmem>>, vector<1x128xf32>
    %c0_3 = arith.constant 0 : index
    %c0_4 = arith.constant 0 : index
    %2 = vector.load %arg5[%c0_3, %c0_4] : memref<128x128xbf16, #tpu.memory_space<vmem>>, vector<128x128xbf16>
    %c0_5 = arith.constant 0 : index
    %c0_6 = arith.constant 0 : index
    %3 = vector.load %arg6[%c0_5, %c0_6] : memref<1x128xf32, #tpu.memory_space<vmem>>, vector<1x128xf32>
    %c0_7 = arith.constant 0 : index
    %c0_8 = arith.constant 0 : index
    %4 = vector.load %arg1[%c0_7, %c0_8] : memref<16x784xbf16, #tpu.memory_space<vmem>>, vector<16x784xbf16>
    %cst = arith.constant dense<0.000000e+00> : vector<16x128xf32>
    %5 = tpu.matmul %4, %0, %cst {dimension_numbers = #tpu.dot_dimension_numbers<[1], [0], [0], [1], [0, 0, 1, 1], [], []>} : vector<16x784xbf16>, vector<784x128xbf16>, vector<16x128xf32> -> vector<16x128xf32>
    %6 = vector.broadcast %1 : vector<1x128xf32> to vector<16x128xf32>
    %7 = arith.addf %5, %6 : vector<16x128xf32>
    %cst_9 = arith.constant 0.000000e+00 : f32
    %8 = vector.broadcast %cst_9 : f32 to vector<16x128xf32>
    %9 = arith.maximumf %7, %8 : vector<16x128xf32>
    %10 = arith.truncf %9 : vector<16x128xf32> to vector<16x128xbf16>
    %cst_10 = arith.constant dense<0.000000e+00> : vector<16x128xf32>
    %11 = tpu.matmul %10, %2, %cst_10 {dimension_numbers = #tpu.dot_dimension_numbers<[1], [0], [0], [1], [0, 0, 1, 1], [], []>} : vector<16x128xbf16>, vector<128x128xbf16>, vector<16x128xf32> -> vector<16x128xf32>
    %12 = vector.broadcast %3 : vector<1x128xf32> to vector<16x128xf32>
    %13 = arith.addf %11, %12 : vector<16x128xf32>
    %cst_11 = arith.constant 0.000000e+00 : f32
    %14 = vector.broadcast %cst_11 : f32 to vector<16x128xf32>
    %15 = arith.maximumf %13, %14 : vector<16x128xf32>
    %16 = arith.truncf %15 : vector<16x128xf32> to vector<16x128xbf16>
    %c0_12 = arith.constant 0 : index
    %c0_13 = arith.constant 0 : index
    %c0_14 = arith.constant 0 : index
    %17 = vector.load %arg7[%c0_12, %c0_13, %c0_14] : memref<2x16x128xbf16, #tpu.memory_space<vmem>>, vector<1x16x128xbf16>
    %18 = vector.shape_cast %17 : vector<1x16x128xbf16> to vector<16x128xbf16>
    %19 = vector.shape_cast %16 : vector<16x128xbf16> to vector<1x16x128xbf16>
    tpu.vector_store %arg7[%c0_12, %c0_13, %c0_14], %19 {strides = array<i32>} : memref<2x16x128xbf16, #tpu.memory_space<vmem>>, vector<1x16x128xbf16>,
    %c0_15 = arith.constant 0 : index
    %c0_16 = arith.constant 0 : index
    %20 = vector.load %arg2[%c0_15, %c0_16] : memref<16x784xbf16, #tpu.memory_space<vmem>>, vector<16x784xbf16>
    %cst_17 = arith.constant dense<0.000000e+00> : vector<16x128xf32>
    %21 = tpu.matmul %20, %0, %cst_17 {dimension_numbers = #tpu.dot_dimension_numbers<[1], [0], [0], [1], [0, 0, 1, 1], [], []>} : vector<16x784xbf16>, vector<784x128xbf16>, vector<16x128xf32> -> vector<16x128xf32>
    %22 = vector.broadcast %1 : vector<1x128xf32> to vector<16x128xf32>
    %23 = arith.addf %21, %22 : vector<16x128xf32>
    %cst_18 = arith.constant 0.000000e+00 : f32
    %24 = vector.broadcast %cst_18 : f32 to vector<16x128xf32>
    %25 = arith.maximumf %23, %24 : vector<16x128xf32>
    %26 = arith.truncf %25 : vector<16x128xf32> to vector<16x128xbf16>
    %cst_19 = arith.constant dense<0.000000e+00> : vector<16x128xf32>
    %27 = tpu.matmul %26, %2, %cst_19 {dimension_numbers = #tpu.dot_dimension_numbers<[1], [0], [0], [1], [0, 0, 1, 1], [], []>} : vector<16x128xbf16>, vector<128x128xbf16>, vector<16x128xf32> -> vector<16x128xf32>
    %28 = vector.broadcast %3 : vector<1x128xf32> to vector<16x128xf32>
    %29 = arith.addf %27, %28 : vector<16x128xf32>
    %cst_20 = arith.constant 0.000000e+00 : f32
    %30 = vector.broadcast %cst_20 : f32 to vector<16x128xf32>
    %31 = arith.maximumf %29, %30 : vector<16x128xf32>
    %32 = arith.truncf %31 : vector<16x128xf32> to vector<16x128xbf16>
    %c1 = arith.constant 1 : index
    %c0_21 = arith.constant 0 : index
    %c0_22 = arith.constant 0 : index
    %33 = vector.load %arg7[%c1, %c0_21, %c0_22] : memref<2x16x128xbf16, #tpu.memory_space<vmem>>, vector<1x16x128xbf16>
    %34 = vector.shape_cast %33 : vector<1x16x128xbf16> to vector<16x128xbf16>
    %35 = vector.shape_cast %32 : vector<16x128xbf16> to vector<1x16x128xbf16>
    tpu.vector_store %arg7[%c1, %c0_21, %c0_22], %35 {strides = array<i32>} : memref<2x16x128xbf16, #tpu.memory_space<vmem>>, vector<1x16x128xbf16>,
    return
  }
  func.func @transform_0(%arg0: i32) -> (i32, i32) {
    %c0_i32 = arith.constant 0 : i32
    %c0_i32_0 = arith.constant 0 : i32
    return %arg0, %c0_i32 : i32, i32
  }
  func.func @transform_1(%arg0: i32) -> (i32, i32) {
    %c0_i32 = arith.constant 0 : i32
    %c0_i32_0 = arith.constant 0 : i32
    return %arg0, %c0_i32 : i32, i32
  }
  func.func @transform_2(%arg0: i32) -> (i32, i32) {
    %c0_i32 = arith.constant 0 : i32
    %c0_i32_0 = arith.constant 0 : i32
    %c0_i32_1 = arith.constant 0 : i32
    return %c0_i32, %c0_i32_0 : i32, i32
  }
  func.func @transform_3(%arg0: i32) -> (i32, i32) {
    %c0_i32 = arith.constant 0 : i32
    %c0_i32_0 = arith.constant 0 : i32
    %c0_i32_1 = arith.constant 0 : i32
    return %c0_i32, %c0_i32_0 : i32, i32
  }
  func.func @transform_4(%arg0: i32) -> (i32, i32) {
    %c0_i32 = arith.constant 0 : i32
    %c0_i32_0 = arith.constant 0 : i32
    %c0_i32_1 = arith.constant 0 : i32
    return %c0_i32, %c0_i32_0 : i32, i32
  }
  func.func @transform_5(%arg0: i32) -> (i32, i32) {
    %c0_i32 = arith.constant 0 : i32
    %c0_i32_0 = arith.constant 0 : i32
    %c0_i32_1 = arith.constant 0 : i32
    return %c0_i32, %c0_i32_0 : i32, i32
  }
  func.func @transform_6(%arg0: i32) -> (i32, i32, i32) {
    %c0_i32 = arith.constant 0 : i32
    %c0_i32_0 = arith.constant 0 : i32
    %c0_i32_1 = arith.constant 0 : i32
    return %c0_i32, %arg0, %c0_i32_0 : i32, i32, i32
  }
}

</mosaic_0001>

<llo_original>
// kernel: tpu_custom_call.1
$region0: #{tpu_custom_call.1}
  #allocation0 [shape = 'u32[]', space=smem, size = 0x4, offset = 0x4, fixed_abs, tag = 'smem constant byte address 0x4 - core index']
  #allocation1 [shape = 'u32[144,128]{1,0:T(1,128)}', space=vmem, size = 0x12000, scoped, tag = 'internal scratch']
  %s0 = inlined_call_operand.hbm [shape: bf16[16,784], index: 0, kind: input, shape index: {}]
  %s1 = inlined_call_operand.hbm [shape: bf16[16,784], index: 1, kind: input, shape index: {}]
  %s2 = inlined_call_operand.hbm [shape: bf16[784,128], index: 2, kind: input, shape index: {}]
  %s3 = inlined_call_operand.vmem [shape: f32[1,128], index: 3, kind: input, shape index: {}]
  %s4 = inlined_call_operand.hbm [shape: bf16[128,128], index: 4, kind: input, shape index: {}]
  %s5 = inlined_call_operand.vmem [shape: f32[1,128], index: 5, kind: input, shape index: {}]
  %s6 = inlined_call_operand.hbm [shape: bf16[2,16,128], index: 6, kind: output, shape index: {}]
  %s7 = sld [smem:[#allocation0]]
  $region50: #{tpu_custom_call.1} parent=0
    _
  %s9 = ssub.s32 1, %s7
  %s10 = scalar_select 0, %s9, %s7
  $region1: #{tpu_custom_call.1} parent=0
    #allocation2 [shape = 'u8[28672]{0}', space=vmem, size = 0x7000, scoped, tag = 'input window, operand 0, single buffered']
    #allocation3 [shape = 's32[1]{0}', space=sflag, size = 0x4, scoped, tag = 'scoped memory for tpu_custom_call.1']
    #allocation4 [shape = 's32[1]{0}', space=sflag, size = 0x4, scoped, tag = 'scoped memory for tpu_custom_call.1']
    #allocation5 [shape = 'u8[28672]{0}', space=vmem, size = 0x7000, scoped, tag = 'input window, operand 1, single buffered']
    #allocation6 [shape = 's32[1]{0}', space=sflag, size = 0x4, scoped, tag = 'scoped memory for tpu_custom_call.1']
    #allocation7 [shape = 'u8[200704]{0}', space=vmem, size = 0x31000, scoped, tag = 'input window, operand 2, single buffered']
    #allocation8 [shape = 'u8[32768]{0}', space=vmem, size = 0x8000, scoped, tag = 'input window, operand 4, single buffered']
    #allocation9 [shape = 's32[1]{0}', space=sflag, size = 0x4, scoped, tag = 'scoped memory for tpu_custom_call.1']
    #allocation10 [shape = 'u8[8192]{0}', space=vmem, size = 0x2000, scoped, tag = 'output window, operand 0, single buffered']
    %11 = vsyncpa [#allocation3], 0
    %12 = vsyncpa [#allocation6], 0
    %13 = vsyncpa [#allocation9], 0
    %14 = vsyncpa [#allocation4], 0
    // Predicated region
    $region2: #{tpu_custom_call.1} parent=1 // pred_check
      _
    $region3: #{tpu_custom_call.1} parent=1 // pred_check_branch
      %16 = sbr.rel (0) target = $region5
    $region4: #{tpu_custom_call.1} parent=1 // pred_region
      %s18 = ssub.s32 896, 896
      %19 = vsyncadd [#allocation3], %s18
      %s20 = sshll.u32 [#allocation2], 4
      %s21 = int_to_ptr.vmem [resolvable:$true] %s20
      %26 = dma.hbm_to_vmem [thread:$0]  %s0, 896, %s21, [#allocation3], 448, 448, 28
    $region5: #{tpu_custom_call.1} parent=1 // pred_fallthru
      _
    // Predicated region
    $region6: #{tpu_custom_call.1} parent=1 // pred_check
      _
    $region7: #{tpu_custom_call.1} parent=1 // pred_check_branch
      %28 = sbr.rel (0) target = $region9
    $region8: #{tpu_custom_call.1} parent=1 // pred_region
      %s30 = ssub.s32 896, 896
      %31 = vsyncadd [#allocation6], %s30
      %s32 = sshll.u32 [#allocation5], 4
      %s33 = int_to_ptr.vmem [resolvable:$true] %s32
      %38 = dma.hbm_to_vmem [thread:$0]  %s1, 896, %s33, [#allocation6], 448, 448, 28
    $region9: #{tpu_custom_call.1} parent=1 // pred_fallthru
      _
    // Predicated region
    $region10: #{tpu_custom_call.1} parent=1 // pred_check
      _
    $region11: #{tpu_custom_call.1} parent=1 // pred_check_branch
      %40 = sbr.rel (0) target = $region13
    $region12: #{tpu_custom_call.1} parent=1 // pred_region
      %s42 = ssub.s32 6272, 6272
      %43 = vsyncadd [#allocation6], %s42
      %s44 = sshll.u32 [#allocation7], 4
      %s45 = int_to_ptr.vmem [resolvable:$true] %s44
      %50 = dma.hbm_to_vmem [thread:$0]  %s2, 6272, %s45, [#allocation6], 64, 64, 4
    $region13: #{tpu_custom_call.1} parent=1 // pred_fallthru
      _
    // Predicated region
    $region14: #{tpu_custom_call.1} parent=1 // pred_check
      _
    $region15: #{tpu_custom_call.1} parent=1 // pred_check_branch
      %52 = sbr.rel (0) target = $region17
    $region16: #{tpu_custom_call.1} parent=1 // pred_region
      _
    $region17: #{tpu_custom_call.1} parent=1 // pred_fallthru
      _
    // Predicated region
    $region18: #{tpu_custom_call.1} parent=1 // pred_check
      _
    $region19: #{tpu_custom_call.1} parent=1 // pred_check_branch
      %54 = sbr.rel (0) target = $region21
    $region20: #{tpu_custom_call.1} parent=1 // pred_region
      %s56 = ssub.s32 1024, 1024
      %57 = vsyncadd [#allocation9], %s56
      %s58 = sshll.u32 [#allocation8], 4
      %s59 = int_to_ptr.vmem [resolvable:$true] %s58
      %64 = dma.hbm_to_vmem [thread:$0]  %s4, 1024, %s59, [#allocation9], 64, 64, 4
    $region21: #{tpu_custom_call.1} parent=1 // pred_fallthru
      _
    // Predicated region
    $region22: #{tpu_custom_call.1} parent=1 // pred_check
      _
    $region23: #{tpu_custom_call.1} parent=1 // pred_check_branch
      %66 = sbr.rel (0) target = $region25
    $region24: #{tpu_custom_call.1} parent=1 // pred_region
      _
    $region25: #{tpu_custom_call.1} parent=1 // pred_fallthru
      _
    // Predicated region
    $region26: #{tpu_custom_call.1} parent=1 // pred_check
      _
    $region27: #{tpu_custom_call.1} parent=1 // pred_check_branch
      %68 = sbr.rel (0) target = $region29
    $region28: #{tpu_custom_call.1} parent=1 // pred_region
      %69 = dma.done [#allocation3], 896
    $region29: #{tpu_custom_call.1} parent=1 // pred_fallthru
      _
    // Predicated region
    $region30: #{tpu_custom_call.1} parent=1 // pred_check
      _
    $region31: #{tpu_custom_call.1} parent=1 // pred_check_branch
      %71 = sbr.rel (0) target = $region33
    $region32: #{tpu_custom_call.1} parent=1 // pred_region
      %72 = dma.done [#allocation6], 896
    $region33: #{tpu_custom_call.1} parent=1 // pred_fallthru
      _
    // Predicated region
    $region34: #{tpu_custom_call.1} parent=1 // pred_check
      _
    $region35: #{tpu_custom_call.1} parent=1 // pred_check_branch
      %74 = sbr.rel (0) target = $region37
    $region36: #{tpu_custom_call.1} parent=1 // pred_region
      %75 = dma.done [#allocation6], 6272
    $region37: #{tpu_custom_call.1} parent=1 // pred_fallthru
      _
    // Predicated region
    $region38: #{tpu_custom_call.1} parent=1 // pred_check
      _
    $region39: #{tpu_custom_call.1} parent=1 // pred_check_branch
      %77 = sbr.rel (0) target = $region41
    $region40: #{tpu_custom_call.1} parent=1 // pred_region
      %78 = dma.done [#allocation9], 1024
    $region41: #{tpu_custom_call.1} parent=1 // pred_fallthru
      _
    %v80 = vld [vmem:[#allocation7] sm:$0xf]
    %v81 = vld [vmem:[#allocation7 + $0x4] sm:$0xf]
    %v82 = vld [vmem:[#allocation7 + $0x8] sm:$0xf]
    %v83 = vld [vmem:[#allocation7 + $0xc] sm:$0xf]
    %v84 = vld [vmem:[#allocation7 + $0x10] sm:$0xf]
    %v85 = vld [vmem:[#allocation7 + $0x14] sm:$0xf]
    %v86 = vld [vmem:[#allocation7 + $0x18] sm:$0xf]
    %v87 = vld [vmem:[#allocation7 + $0x1c] sm:$0xf]
    %v88 = vld [vmem:[#allocation7 + $0x20] sm:$0xf]
    %v89 = vld [vmem:[#allocation7 + $0x24] sm:$0xf]
    %v90 = vld [vmem:[#allocation7 + $0x28] sm:$0xf]
    %v91 = vld [vmem:[#allocation7 + $0x2c] sm:$0xf]
    %v92 = vld [vmem:[#allocation7 + $0x30] sm:$0xf]
    %v93 = vld [vmem:[#allocation7 + $0x34] sm:$0xf]
    %v94 = vld [vmem:[#allocation7 + $0x38] sm:$0xf]
    %v95 = vld [vmem:[#allocation7 + $0x3c] sm:$0xf]
    %v96 = vld [vmem:[#allocation7 + $0x40] sm:$0xf]
    %v97 = vld [vmem:[#allocation7 + $0x44] sm:$0xf]
    %v98 = vld [vmem:[#allocation7 + $0x48] sm:$0xf]
    %v99 = vld [vmem:[#allocation7 + $0x4c] sm:$0xf]
    %v100 = vld [vmem:[#allocation7 + $0x50] sm:$0xf]
    %v101 = vld [vmem:[#allocation7 + $0x54] sm:$0xf]
    %v102 = vld [vmem:[#allocation7 + $0x58] sm:$0xf]
    %v103 = vld [vmem:[#allocation7 + $0x5c] sm:$0xf]
    %v104 = vld [vmem:[#allocation7 + $0x60] sm:$0xf]
    %v105 = vld [vmem:[#allocation7 + $0x64] sm:$0xf]
    %v106 = vld [vmem:[#allocation7 + $0x68] sm:$0xf]
    %v107 = vld [vmem:[#allocation7 + $0x6c] sm:$0xf]
    %v108 = vld [vmem:[#allocation7 + $0x70] sm:$0xf]
    %v109 = vld [vmem:[#allocation7 + $0x74] sm:$0xf]
    %v110 = vld [vmem:[#allocation7 + $0x78] sm:$0xf]
    %v111 = vld [vmem:[#allocation7 + $0x7c] sm:$0xf]
    %v112 = vld [vmem:[#allocation7 + $0x80] sm:$0xf]
    %v113 = vld [vmem:[#allocation7 + $0x84] sm:$0xf]
    %v114 = vld [vmem:[#allocation7 + $0x88] sm:$0xf]
    %v115 = vld [vmem:[#allocation7 + $0x8c] sm:$0xf]
    %v116 = vld [vmem:[#allocation7 + $0x90] sm:$0xf]
    %v117 = vld [vmem:[#allocation7 + $0x94] sm:$0xf]
    %v118 = vld [vmem:[#allocation7 + $0x98] sm:$0xf]
    %v119 = vld [vmem:[#allocation7 + $0x9c] sm:$0xf]
    %v120 = vld [vmem:[#allocation7 + $0xa0] sm:$0xf]
    %v121 = vld [vmem:[#allocation7 + $0xa4] sm:$0xf]
    %v122 = vld [vmem:[#allocation7 + $0xa8] sm:$0xf]
    %v123 = vld [vmem:[#allocation7 + $0xac] sm:$0xf]
    %v124 = vld [vmem:[#allocation7 + $0xb0] sm:$0xf]
    %v125 = vld [vmem:[#allocation7 + $0xb4] sm:$0xf]
    %v126 = vld [vmem:[#allocation7 + $0xb8] sm:$0xf]
    %v127 = vld [vmem:[#allocation7 + $0xbc] sm:$0xf]
    %v128 = vld [vmem:[#allocation7 + $0xc0] sm:$0xf]
    %v129 = vld [vmem:[#allocation7 + $0xc4] sm:$0xf]
    %v130 = vld [vmem:[#allocation7 + $0xc8] sm:$0xf]
    %v131 = vld [vmem:[#allocation7 + $0xcc] sm:$0xf]
    %v132 = vld [vmem:[#allocation7 + $0xd0] sm:$0xf]
    %v133 = vld [vmem:[#allocation7 + $0xd4] sm:$0xf]
    %v134 = vld [vmem:[#allocation7 + $0xd8] sm:$0xf]
    %v135 = vld [vmem:[#allocation7 + $0xdc] sm:$0xf]
    %v136 = vld [vmem:[#allocation7 + $0xe0] sm:$0xf]
    %v137 = vld [vmem:[#allocation7 + $0xe4] sm:$0xf]
    %v138 = vld [vmem:[#allocation7 + $0xe8] sm:$0xf]
    %v139 = vld [vmem:[#allocation7 + $0xec] sm:$0xf]
    %v140 = vld [vmem:[#allocation7 + $0xf0] sm:$0xf]
    %v141 = vld [vmem:[#allocation7 + $0xf4] sm:$0xf]
    %v142 = vld [vmem:[#allocation7 + $0xf8] sm:$0xf]
    %v143 = vld [vmem:[#allocation7 + $0xfc] sm:$0xf]
    %v144 = vld [vmem:[#allocation7 + $0x100] sm:$0xf]
    %v145 = vld [vmem:[#allocation7 + $0x104] sm:$0xf]
    %v146 = vld [vmem:[#allocation7 + $0x108] sm:$0xf]
    %v147 = vld [vmem:[#allocation7 + $0x10c] sm:$0xf]
    %v148 = vld [vmem:[#allocation7 + $0x110] sm:$0xf]
    %v149 = vld [vmem:[#allocation7 + $0x114] sm:$0xf]
    %v150 = vld [vmem:[#allocation7 + $0x118] sm:$0xf]
    %v151 = vld [vmem:[#allocation7 + $0x11c] sm:$0xf]
    %v152 = vld [vmem:[#allocation7 + $0x120] sm:$0xf]
    %v153 = vld [vmem:[#allocation7 + $0x124] sm:$0xf]
    %v154 = vld [vmem:[#allocation7 + $0x128] sm:$0xf]
    %v155 = vld [vmem:[#allocation7 + $0x12c] sm:$0xf]
    %v156 = vld [vmem:[#allocation7 + $0x130] sm:$0xf]
    %v157 = vld [vmem:[#allocation7 + $0x134] sm:$0xf]
    %v158 = vld [vmem:[#allocation7 + $0x138] sm:$0xf]
    %v159 = vld [vmem:[#allocation7 + $0x13c] sm:$0xf]
    %v160 = vld [vmem:[#allocation7 + $0x140] sm:$0xf]
    %v161 = vld [vmem:[#allocation7 + $0x144] sm:$0xf]
    %v162 = vld [vmem:[#allocation7 + $0x148] sm:$0xf]
    %v163 = vld [vmem:[#allocation7 + $0x14c] sm:$0xf]
    %v164 = vld [vmem:[#allocation7 + $0x150] sm:$0xf]
    %v165 = vld [vmem:[#allocation7 + $0x154] sm:$0xf]
    %v166 = vld [vmem:[#allocation7 + $0x158] sm:$0xf]
    %v167 = vld [vmem:[#allocation7 + $0x15c] sm:$0xf]
    %v168 = vld [vmem:[#allocation7 + $0x160] sm:$0xf]
    %v169 = vld [vmem:[#allocation7 + $0x164] sm:$0xf]
    %v170 = vld [vmem:[#allocation7 + $0x168] sm:$0xf]
    %v171 = vld [vmem:[#allocation7 + $0x16c] sm:$0xf]
    %v172 = vld [vmem:[#allocation7 + $0x170] sm:$0xf]
    %v173 = vld [vmem:[#allocation7 + $0x174] sm:$0xf]
    %v174 = vld [vmem:[#allocation7 + $0x178] sm:$0xf]
    %v175 = vld [vmem:[#allocation7 + $0x17c] sm:$0xf]
    %v176 = vld [vmem:[#allocation7 + $0x180] sm:$0xf]
    %v177 = vld [vmem:[#allocation7 + $0x184] sm:$0xf]
    %v178 = vld [vmem:[%s3] sm:$0x1]
    %v179 = vld [vmem:[#allocation8] sm:$0xf]
    %v180 = vld [vmem:[#allocation8 + $0x4] sm:$0xf]
    %v181 = vld [vmem:[#allocation8 + $0x8] sm:$0xf]
    %v182 = vld [vmem:[#allocation8 + $0xc] sm:$0xf]
    %v183 = vld [vmem:[#allocation8 + $0x10] sm:$0xf]
    %v184 = vld [vmem:[#allocation8 + $0x14] sm:$0xf]
    %v185 = vld [vmem:[#allocation8 + $0x18] sm:$0xf]
    %v186 = vld [vmem:[#allocation8 + $0x1c] sm:$0xf]
    %v187 = vld [vmem:[#allocation8 + $0x20] sm:$0xf]
    %v188 = vld [vmem:[#allocation8 + $0x24] sm:$0xf]
    %v189 = vld [vmem:[#allocation8 + $0x28] sm:$0xf]
    %v190 = vld [vmem:[#allocation8 + $0x2c] sm:$0xf]
    %v191 = vld [vmem:[#allocation8 + $0x30] sm:$0xf]
    %v192 = vld [vmem:[#allocation8 + $0x34] sm:$0xf]
    %v193 = vld [vmem:[#allocation8 + $0x38] sm:$0xf]
    %v194 = vld [vmem:[#allocation8 + $0x3c] sm:$0xf]
    %v195 = vld [vmem:[%s5] sm:$0x1]
    %v196 = vld [vmem:[#allocation2] sm:$0xff]
    %v197 = vld [vmem:[#allocation2 + $0x8] sm:$0xff]
    %v198 = vld [vmem:[#allocation2 + $0x10] sm:$0xff]
    %v199 = vld [vmem:[#allocation2 + $0x18] sm:$0xf]
    %v200 = vld [vmem:[#allocation2 + $0x1c] sm:$0xff]
    %v201 = vld [vmem:[#allocation2 + $0x24] sm:$0xff]
    %v202 = vld [vmem:[#allocation2 + $0x2c] sm:$0xff]
    %v203 = vld [vmem:[#allocation2 + $0x34] sm:$0xf]
    %v205 = vlaneseq
    %v206 = vshrl.u32 %v205, 7
    %v207 = vsub.s32 0, %v206
    %v208 = vrot.slane %v178, %v207
    %v218 = vunpack.c.l.b16 %v196
    %v219 = vunpack.c.h.b16 %v196
    %v220 = vunpack.c.l.b16 %v197
    %v221 = vunpack.c.h.b16 %v197
    %v222 = vunpack.c.l.b16 %v198
    %v223 = vunpack.c.h.b16 %v198
    %v224 = vunpack.c.l.b16 %v199
    %v225 = vunpack.c.l.b16 %v200
    %v226 = vunpack.c.h.b16 %v200
    %v227 = vunpack.c.l.b16 %v201
    %v228 = vunpack.c.h.b16 %v201
    %v229 = vunpack.c.l.b16 %v202
    %v230 = vunpack.c.h.b16 %v202
    %v231 = vunpack.c.l.b16 %v203
    %v232 = vpack.c.b16 %v225, %v218
    %v233 = vpack.c.b16 %v226, %v219
    %v234 = vpack.c.b16 %v227, %v220
    %v235 = vpack.c.b16 %v228, %v221
    %v236 = vpack.c.b16 %v229, %v222
    %v237 = vpack.c.b16 %v230, %v223
    %v238 = vpack.c.b16 %v231, %v224
    %v343 = vunpack.c.l.b16 %v80
    %v344 = vunpack.c.l.b16 %v81
    %v345 = vunpack.c.l.b16 %v82
    %v346 = vunpack.c.l.b16 %v83
    %v347 = vunpack.c.l.b16 %v84
    %v348 = vunpack.c.l.b16 %v85
    %v349 = vunpack.c.l.b16 %v86
    %v350 = vunpack.c.l.b16 %v87
    %v351 = vunpack.c.l.b16 %v88
    %v352 = vunpack.c.l.b16 %v89
    %v353 = vunpack.c.l.b16 %v90
    %v354 = vunpack.c.l.b16 %v91
    %v355 = vunpack.c.l.b16 %v92
    %v356 = vunpack.c.l.b16 %v93
    %v357 = vunpack.c.l.b16 %v94
    %v358 = vunpack.c.l.b16 %v95
    %v359 = vunpack.c.l.b16 %v96
    %v360 = vunpack.c.l.b16 %v97
    %v361 = vunpack.c.l.b16 %v98
    %v362 = vunpack.c.l.b16 %v99
    %v363 = vunpack.c.l.b16 %v100
    %v364 = vunpack.c.l.b16 %v101
    %v365 = vunpack.c.l.b16 %v102
    %v366 = vunpack.c.l.b16 %v103
    %v367 = vunpack.c.l.b16 %v104
    %v368 = vunpack.c.l.b16 %v105
    %v369 = vunpack.c.l.b16 %v106
    %v370 = vunpack.c.l.b16 %v107
    %v371 = vunpack.c.l.b16 %v108
    %v372 = vunpack.c.l.b16 %v109
    %v373 = vunpack.c.l.b16 %v110
    %v374 = vunpack.c.l.b16 %v111
    %v375 = vunpack.c.l.b16 %v112
    %v376 = vunpack.c.l.b16 %v113
    %v377 = vunpack.c.l.b16 %v114
    %v378 = vunpack.c.l.b16 %v115
    %v379 = vunpack.c.l.b16 %v116
    %v380 = vunpack.c.l.b16 %v117
    %v381 = vunpack.c.l.b16 %v118
    %v382 = vunpack.c.l.b16 %v119
    %v383 = vunpack.c.l.b16 %v120
    %v384 = vunpack.c.l.b16 %v121
    %v385 = vunpack.c.l.b16 %v122
    %v386 = vunpack.c.l.b16 %v123
    %v387 = vunpack.c.l.b16 %v124
    %v388 = vunpack.c.l.b16 %v125
    %v389 = vunpack.c.l.b16 %v126
    %v390 = vunpack.c.l.b16 %v127
    %v391 = vunpack.c.l.b16 %v128
    %v392 = vunpack.c.l.b16 %v129
    %v393 = vunpack.c.l.b16 %v130
    %v394 = vunpack.c.l.b16 %v131
    %v395 = vunpack.c.l.b16 %v132
    %v396 = vunpack.c.l.b16 %v133
    %v397 = vunpack.c.l.b16 %v134
    %v398 = vunpack.c.l.b16 %v135
    %v399 = vunpack.c.l.b16 %v136
    %v400 = vunpack.c.l.b16 %v137
    %v401 = vunpack.c.l.b16 %v138
    %v402 = vunpack.c.l.b16 %v139
    %v403 = vunpack.c.l.b16 %v140
    %v404 = vunpack.c.l.b16 %v141
    %v405 = vunpack.c.l.b16 %v142
    %v406 = vunpack.c.l.b16 %v143
    %v407 = vunpack.c.l.b16 %v144
    %v408 = vunpack.c.l.b16 %v145
    %v409 = vunpack.c.l.b16 %v146
    %v410 = vunpack.c.l.b16 %v147
    %v411 = vunpack.c.l.b16 %v148
    %v412 = vunpack.c.l.b16 %v149
    %v413 = vunpack.c.l.b16 %v150
    %v414 = vunpack.c.l.b16 %v151
    %v415 = vunpack.c.l.b16 %v152
    %v416 = vunpack.c.l.b16 %v153
    %v417 = vunpack.c.l.b16 %v154
    %v418 = vunpack.c.l.b16 %v155
    %v419 = vunpack.c.l.b16 %v156
    %v420 = vunpack.c.l.b16 %v157
    %v421 = vunpack.c.l.b16 %v158
    %v422 = vunpack.c.l.b16 %v159
    %v423 = vunpack.c.l.b16 %v160
    %v424 = vunpack.c.l.b16 %v161
    %v425 = vunpack.c.l.b16 %v162
    %v426 = vunpack.c.l.b16 %v163
    %v427 = vunpack.c.l.b16 %v164
    %v428 = vunpack.c.l.b16 %v165
    %v429 = vunpack.c.l.b16 %v166
    %v430 = vunpack.c.l.b16 %v167
    %v431 = vunpack.c.l.b16 %v168
    %v432 = vunpack.c.l.b16 %v169
    %v433 = vunpack.c.l.b16 %v170
    %v434 = vunpack.c.l.b16 %v171
    %v435 = vunpack.c.l.b16 %v172
    %v436 = vunpack.c.l.b16 %v173
    %v437 = vunpack.c.l.b16 %v174
    %v438 = vunpack.c.l.b16 %v175
    %v439 = vunpack.c.l.b16 %v176
    %v440 = vunpack.c.l.b16 %v177
    %v441 = vpack.c.b16 %v344, %v343
    %v442 = vpack.c.b16 %v346, %v345
    %v443 = vpack.c.b16 %v348, %v347
    %v444 = vpack.c.b16 %v350, %v349
    %v445 = vpack.c.b16 %v352, %v351
    %v446 = vpack.c.b16 %v354, %v353
    %v447 = vpack.c.b16 %v356, %v355
    %v448 = vpack.c.b16 %v358, %v357
    %v449 = vpack.c.b16 %v360, %v359
    %v450 = vpack.c.b16 %v362, %v361
    %v451 = vpack.c.b16 %v364, %v363
    %v452 = vpack.c.b16 %v366, %v365
    %v453 = vpack.c.b16 %v368, %v367
    %v454 = vpack.c.b16 %v370, %v369
    %v455 = vpack.c.b16 %v372, %v371
    %v456 = vpack.c.b16 %v374, %v373
    %v457 = vpack.c.b16 %v376, %v375
    %v458 = vpack.c.b16 %v378, %v377
    %v459 = vpack.c.b16 %v380, %v379
    %v460 = vpack.c.b16 %v382, %v381
    %v461 = vpack.c.b16 %v384, %v383
    %v462 = vpack.c.b16 %v386, %v385
    %v463 = vpack.c.b16 %v388, %v387
    %v464 = vpack.c.b16 %v390, %v389
    %v465 = vpack.c.b16 %v392, %v391
    %v466 = vpack.c.b16 %v394, %v393
    %v467 = vpack.c.b16 %v396, %v395
    %v468 = vpack.c.b16 %v398, %v397
    %v469 = vpack.c.b16 %v400, %v399
    %v470 = vpack.c.b16 %v402, %v401
    %v471 = vpack.c.b16 %v404, %v403
    %v472 = vpack.c.b16 %v406, %v405
    %v473 = vpack.c.b16 %v408, %v407
    %v474 = vpack.c.b16 %v410, %v409
    %v475 = vpack.c.b16 %v412, %v411
    %v476 = vpack.c.b16 %v414, %v413
    %v477 = vpack.c.b16 %v416, %v415
    %v478 = vpack.c.b16 %v418, %v417
    %v479 = vpack.c.b16 %v420, %v419
    %v480 = vpack.c.b16 %v422, %v421
    %v481 = vpack.c.b16 %v424, %v423
    %v482 = vpack.c.b16 %v426, %v425
    %v483 = vpack.c.b16 %v428, %v427
    %v484 = vpack.c.b16 %v430, %v429
    %v485 = vpack.c.b16 %v432, %v431
    %v486 = vpack.c.b16 %v434, %v433
    %v487 = vpack.c.b16 %v436, %v435
    %v488 = vpack.c.b16 %v438, %v437
    %v489 = vpack.c.b16 %v440, %v439
    %vm539 = vcmask 130048
    %v541 = vsel %vm539, %v238, 0
    %543 = vmatprep.subr.bf16.mxu0 0
    %544 = vmatpush1.bf16.msra.mxu0 %v448
    %545 = vmatprep.subr.bf16.mxu0 0
    %546 = vmatpush1.bf16.msra.mxu0 %v447
    %547 = vmatprep.subr.bf16.mxu0 0
    %548 = vmatpush1.bf16.msra.mxu0 %v446
    %549 = vmatprep.subr.bf16.mxu0 0
    %550 = vmatpush1.bf16.msra.mxu0 %v445
    %551 = vmatprep.subr.bf16.mxu0 0
    %552 = vmatpush1.bf16.msra.mxu0 %v444
    %553 = vmatprep.subr.bf16.mxu0 0
    %554 = vmatpush1.bf16.msra.mxu0 %v443
    %555 = vmatprep.subr.bf16.mxu0 0
    %556 = vmatpush1.bf16.msra.mxu0 %v442
    %557 = vmatprep.subr.bf16.mxu0 0
    %558 = vmatpush1.bf16.msra.mxu0 %v441
    %559 = vmatprep.subr.bf16.mxu0 0
    %560 = vmatpush2.bf16.msra.mxu0 %v456
    %561 = vmatprep.subr.bf16.mxu0 0
    %562 = vmatpush2.bf16.msra.mxu0 %v455
    %563 = vmatprep.subr.bf16.mxu0 0
    %564 = vmatpush2.bf16.msra.mxu0 %v454
    %565 = vmatprep.subr.bf16.mxu0 0
    %566 = vmatpush2.bf16.msra.mxu0 %v453
    %567 = vmatprep.subr.bf16.mxu0 0
    %568 = vmatpush2.bf16.msra.mxu0 %v452
    %569 = vmatprep.subr.bf16.mxu0 0
    %570 = vmatpush2.bf16.msra.mxu0 %v451
    %571 = vmatprep.subr.bf16.mxu0 0
    %572 = vmatpush2.bf16.msra.mxu0 %v450
    %573 = vmatprep.subr.bf16.mxu0 0
    %574 = vmatpush2.bf16.msra.mxu0 %v449
    %575 = vmatprep.mubr.bf16.mxu0 %v233
    %576 = vmatmul.mubr.bf16.gmra.mxu0 %v232
    %v577 = vpop.f32.mrf.mxu0
    %v578 = vadd.f32 %v208, %v577
    %v579 = vpop.f32.mrf.mxu0
    %v580 = vpop.f32.mrf.mxu0
    %v581 = vadd.f32 %v208, %v580
    %v582 = vpop.f32.mrf.mxu0
    %583 = vdwg.mxu0
    %584 = vmatprep.subr.bf16.mxu0 0
    %585 = vmatpush1.bf16.msra.mxu0 %v464
    %586 = vmatprep.subr.bf16.mxu0 0
    %587 = vmatpush1.bf16.msra.mxu0 %v463
    %588 = vmatprep.subr.bf16.mxu0 0
    %589 = vmatpush1.bf16.msra.mxu0 %v462
    %590 = vmatprep.subr.bf16.mxu0 0
    %591 = vmatpush1.bf16.msra.mxu0 %v461
    %592 = vmatprep.subr.bf16.mxu0 0
    %593 = vmatpush1.bf16.msra.mxu0 %v460
    %594 = vmatprep.subr.bf16.mxu0 0
    %595 = vmatpush1.bf16.msra.mxu0 %v459
    %596 = vmatprep.subr.bf16.mxu0 0
    %597 = vmatpush1.bf16.msra.mxu0 %v458
    %598 = vmatprep.subr.bf16.mxu0 0
    %599 = vmatpush1.bf16.msra.mxu0 %v457
    %600 = vmatprep.subr.bf16.mxu0 0
    %601 = vmatpush2.bf16.msra.mxu0 %v472
    %602 = vmatprep.subr.bf16.mxu0 0
    %603 = vmatpush2.bf16.msra.mxu0 %v471
    %604 = vmatprep.subr.bf16.mxu0 0
    %605 = vmatpush2.bf16.msra.mxu0 %v470
    %606 = vmatprep.subr.bf16.mxu0 0
    %607 = vmatpush2.bf16.msra.mxu0 %v469
    %608 = vmatprep.subr.bf16.mxu0 0
    %609 = vmatpush2.bf16.msra.mxu0 %v468
    %610 = vmatprep.subr.bf16.mxu0 0
    %611 = vmatpush2.bf16.msra.mxu0 %v467
    %612 = vmatprep.subr.bf16.mxu0 0
    %613 = vmatpush2.bf16.msra.mxu0 %v466
    %614 = vmatprep.subr.bf16.mxu0 0
    %615 = vmatpush2.bf16.msra.mxu0 %v465
    %616 = vmatprep.mubr.bf16.mxu0 %v235
    %617 = vmatmul.mubr.bf16.gmra.mxu0 %v234
    %v618 = vpop.f32.mrf.mxu0
    %v619 = vadd.f32 %v578, %v618
    %v620 = vpop.f32.mrf.mxu0
    %v621 = vpop.f32.mrf.mxu0
    %v622 = vadd.f32 %v581, %v621
    %v623 = vpop.f32.mrf.mxu0
    %624 = vdwg.mxu0
    %625 = vmatprep.subr.bf16.mxu0 0
    %626 = vmatpush1.bf16.msra.mxu0 %v480
    %627 = vmatprep.subr.bf16.mxu0 0
    %628 = vmatpush1.bf16.msra.mxu0 %v479
    %629 = vmatprep.subr.bf16.mxu0 0
    %630 = vmatpush1.bf16.msra.mxu0 %v478
    %631 = vmatprep.subr.bf16.mxu0 0
    %632 = vmatpush1.bf16.msra.mxu0 %v477
    %633 = vmatprep.subr.bf16.mxu0 0
    %634 = vmatpush1.bf16.msra.mxu0 %v476
    %635 = vmatprep.subr.bf16.mxu0 0
    %636 = vmatpush1.bf16.msra.mxu0 %v475
    %637 = vmatprep.subr.bf16.mxu0 0
    %638 = vmatpush1.bf16.msra.mxu0 %v474
    %639 = vmatprep.subr.bf16.mxu0 0
    %640 = vmatpush1.bf16.msra.mxu0 %v473
    %641 = vmatprep.subr.bf16.mxu0 0
    %642 = vmatpush2.bf16.msra.mxu0 %v488
    %643 = vmatprep.subr.bf16.mxu0 0
    %644 = vmatpush2.bf16.msra.mxu0 %v487
    %645 = vmatprep.subr.bf16.mxu0 0
    %646 = vmatpush2.bf16.msra.mxu0 %v486
    %647 = vmatprep.subr.bf16.mxu0 0
    %648 = vmatpush2.bf16.msra.mxu0 %v485
    %649 = vmatprep.subr.bf16.mxu0 0
    %650 = vmatpush2.bf16.msra.mxu0 %v484
    %651 = vmatprep.subr.bf16.mxu0 0
    %652 = vmatpush2.bf16.msra.mxu0 %v483
    %653 = vmatprep.subr.bf16.mxu0 0
    %654 = vmatpush2.bf16.msra.mxu0 %v482
    %655 = vmatprep.subr.bf16.mxu0 0
    %656 = vmatpush2.bf16.msra.mxu0 %v481
    %657 = vmatprep.mubr.bf16.mxu0 %v237
    %658 = vmatmul.mubr.bf16.gmra.mxu0 %v236
    %v659 = vpop.f32.mrf.mxu0
    %v660 = vadd.f32 %v619, %v659
    %v661 = vpop.f32.mrf.mxu0
    %v662 = vpop.f32.mrf.mxu0
    %v663 = vadd.f32 %v622, %v662
    %v664 = vpop.f32.mrf.mxu0
    %665 = vdwg.mxu0
    %666 = vmatprep.subr.bf16.mxu0 0
    %667 = vmatpush1.bf16.msra.mxu0 0
    %668 = vmatprep.subr.bf16.mxu0 0
    %669 = vmatpush1.bf16.msra.mxu0 0
    %670 = vmatprep.subr.bf16.mxu0 0
    %671 = vmatpush1.bf16.msra.mxu0 0
    %672 = vmatprep.subr.bf16.mxu0 0
    %673 = vmatpush1.bf16.msra.mxu0 0
    %674 = vmatprep.subr.bf16.mxu0 0
    %675 = vmatpush1.bf16.msra.mxu0 0
    %676 = vmatprep.subr.bf16.mxu0 0
    %677 = vmatpush1.bf16.msra.mxu0 0
    %678 = vmatprep.subr.bf16.mxu0 0
    %679 = vmatpush1.bf16.msra.mxu0 0
    %680 = vmatprep.subr.bf16.mxu0 0
    %681 = vmatpush1.bf16.msra.mxu0 %v489
    %682 = vmatprep.subr.bf16.mxu0 0
    %683 = vmatpush2.bf16.msra.mxu0 0
    %684 = vmatprep.subr.bf16.mxu0 0
    %685 = vmatpush2.bf16.msra.mxu0 0
    %686 = vmatprep.subr.bf16.mxu0 0
    %687 = vmatpush2.bf16.msra.mxu0 0
    %688 = vmatprep.subr.bf16.mxu0 0
    %689 = vmatpush2.bf16.msra.mxu0 0
    %690 = vmatprep.subr.bf16.mxu0 0
    %691 = vmatpush2.bf16.msra.mxu0 0
    %692 = vmatprep.subr.bf16.mxu0 0
    %693 = vmatpush2.bf16.msra.mxu0 0
    %694 = vmatprep.subr.bf16.mxu0 0
    %695 = vmatpush2.bf16.msra.mxu0 0
    %696 = vmatprep.subr.bf16.mxu0 0
    %697 = vmatpush2.bf16.msra.mxu0 0
    %698 = vmatprep.mubr.bf16.mxu0 0
    %699 = vmatmul.mubr.bf16.gmra.mxu0 %v541
    %v700 = vpop.f32.mrf.mxu0
    %v701 = vadd.f32 %v660, %v700
    %v702 = vpop.f32.mrf.mxu0
    %v703 = vpop.f32.mrf.mxu0
    %v704 = vadd.f32 %v663, %v703
    %v705 = vpop.f32.mrf.mxu0
    %706 = vdwg.mxu0
    %v707 = vmax.f32 %v701, 0.0
    %v708 = vmax.f32 %v704, 0.0
    %v709 = vpack.c.bf16 %v708, %v707
    %v711 = vlaneseq
    %v712 = vshrl.u32 %v711, 7
    %v713 = vsub.s32 0, %v712
    %v714 = vrot.slane %v195, %v713
    %v732 = vunpack.c.l.b16 %v179
    %v733 = vunpack.c.l.b16 %v180
    %v734 = vunpack.c.l.b16 %v181
    %v735 = vunpack.c.l.b16 %v182
    %v736 = vunpack.c.l.b16 %v183
    %v737 = vunpack.c.l.b16 %v184
    %v738 = vunpack.c.l.b16 %v185
    %v739 = vunpack.c.l.b16 %v186
    %v740 = vunpack.c.l.b16 %v187
    %v741 = vunpack.c.l.b16 %v188
    %v742 = vunpack.c.l.b16 %v189
    %v743 = vunpack.c.l.b16 %v190
    %v744 = vunpack.c.l.b16 %v191
    %v745 = vunpack.c.l.b16 %v192
    %v746 = vunpack.c.l.b16 %v193
    %v747 = vunpack.c.l.b16 %v194
    %v748 = vpack.c.b16 %v733, %v732
    %v749 = vpack.c.b16 %v735, %v734
    %v750 = vpack.c.b16 %v737, %v736
    %v751 = vpack.c.b16 %v739, %v738
    %v752 = vpack.c.b16 %v741, %v740
    %v753 = vpack.c.b16 %v743, %v742
    %v754 = vpack.c.b16 %v745, %v744
    %v755 = vpack.c.b16 %v747, %v746
    %764 = vmatprep.subr.bf16.mxu0 0
    %765 = vmatpush1.bf16.msra.mxu0 %v755
    %766 = vmatprep.subr.bf16.mxu0 0
    %767 = vmatpush1.bf16.msra.mxu0 %v754
    %768 = vmatprep.subr.bf16.mxu0 0
    %769 = vmatpush1.bf16.msra.mxu0 %v753
    %770 = vmatprep.subr.bf16.mxu0 0
    %771 = vmatpush1.bf16.msra.mxu0 %v752
    %772 = vmatprep.subr.bf16.mxu0 0
    %773 = vmatpush1.bf16.msra.mxu0 %v751
    %774 = vmatprep.subr.bf16.mxu0 0
    %775 = vmatpush1.bf16.msra.mxu0 %v750
    %776 = vmatprep.subr.bf16.mxu0 0
    %777 = vmatpush1.bf16.msra.mxu0 %v749
    %778 = vmatprep.subr.bf16.mxu0 0
    %779 = vmatpush1.bf16.msra.mxu0 %v748
    %780 = vmatprep.subr.bf16.mxu0 0
    %781 = vmatpush2.bf16.msra.mxu0 0
    %782 = vmatprep.subr.bf16.mxu0 0
    %783 = vmatpush2.bf16.msra.mxu0 0
    %784 = vmatprep.subr.bf16.mxu0 0
    %785 = vmatpush2.bf16.msra.mxu0 0
    %786 = vmatprep.subr.bf16.mxu0 0
    %787 = vmatpush2.bf16.msra.mxu0 0
    %788 = vmatprep.subr.bf16.mxu0 0
    %789 = vmatpush2.bf16.msra.mxu0 0
    %790 = vmatprep.subr.bf16.mxu0 0
    %791 = vmatpush2.bf16.msra.mxu0 0
    %792 = vmatprep.subr.bf16.mxu0 0
    %793 = vmatpush2.bf16.msra.mxu0 0
    %794 = vmatprep.subr.bf16.mxu0 0
    %795 = vmatpush2.bf16.msra.mxu0 0
    %796 = vmatprep.mubr.bf16.mxu0 0
    %797 = vmatmul.mubr.bf16.gmra.mxu0 %v709
    %v798 = vpop.f32.mrf.mxu0
    %v799 = vadd.f32 %v714, %v798
    %v800 = vpop.f32.mrf.mxu0
    %v801 = vpop.f32.mrf.mxu0
    %v802 = vadd.f32 %v714, %v801
    %v803 = vpop.f32.mrf.mxu0
    %804 = vdwg.mxu0
    %v805 = vmax.f32 %v799, 0.0
    %v806 = vmax.f32 %v802, 0.0
    %v807 = vpack.c.bf16 %v806, %v805
    %v809 = vunpack.c.l.b16 %v807
    %v810 = vunpack.c.h.b16 %v807
    %v811 = vpack.c.b16 %v809, %v809
    %v812 = vpack.c.b16 %v810, %v810
    %815 = vst [vmem:[#allocation10] sm:$0xf] %v811
    %816 = vst [vmem:[#allocation10 + $0x4] sm:$0xf] %v812
    %v817 = vld [vmem:[#allocation5] sm:$0xff]
    %v818 = vld [vmem:[#allocation5 + $0x8] sm:$0xff]
    %v819 = vld [vmem:[#allocation5 + $0x10] sm:$0xff]
    %v820 = vld [vmem:[#allocation5 + $0x18] sm:$0xf]
    %v821 = vld [vmem:[#allocation5 + $0x1c] sm:$0xff]
    %v822 = vld [vmem:[#allocation5 + $0x24] sm:$0xff]
    %v823 = vld [vmem:[#allocation5 + $0x2c] sm:$0xff]
    %v824 = vld [vmem:[#allocation5 + $0x34] sm:$0xf]
    %v833 = vunpack.c.l.b16 %v817
    %v834 = vunpack.c.h.b16 %v817
    %v835 = vunpack.c.l.b16 %v818
    %v836 = vunpack.c.h.b16 %v818
    %v837 = vunpack.c.l.b16 %v819
    %v838 = vunpack.c.h.b16 %v819
    %v839 = vunpack.c.l.b16 %v820
    %v840 = vunpack.c.l.b16 %v821
    %v841 = vunpack.c.h.b16 %v821
    %v842 = vunpack.c.l.b16 %v822
    %v843 = vunpack.c.h.b16 %v822
    %v844 = vunpack.c.l.b16 %v823
    %v845 = vunpack.c.h.b16 %v823
    %v846 = vunpack.c.l.b16 %v824
    %v847 = vpack.c.b16 %v840, %v833
    %v848 = vpack.c.b16 %v841, %v834
    %v849 = vpack.c.b16 %v842, %v835
    %v850 = vpack.c.b16 %v843, %v836
    %v851 = vpack.c.b16 %v844, %v837
    %v852 = vpack.c.b16 %v845, %v838
    %v853 = vpack.c.b16 %v846, %v839
    %v861 = vsel %vm539, %v853, 0
    %863 = vmatprep.subr.bf16.mxu0 0
    %864 = vmatpush1.bf16.msra.mxu0 %v448
    %865 = vmatprep.subr.bf16.mxu0 0
    %866 = vmatpush1.bf16.msra.mxu0 %v447
    %867 = vmatprep.subr.bf16.mxu0 0
    %868 = vmatpush1.bf16.msra.mxu0 %v446
    %869 = vmatprep.subr.bf16.mxu0 0
    %870 = vmatpush1.bf16.msra.mxu0 %v445
    %871 = vmatprep.subr.bf16.mxu0 0
    %872 = vmatpush1.bf16.msra.mxu0 %v444
    %873 = vmatprep.subr.bf16.mxu0 0
    %874 = vmatpush1.bf16.msra.mxu0 %v443
    %875 = vmatprep.subr.bf16.mxu0 0
    %876 = vmatpush1.bf16.msra.mxu0 %v442
    %877 = vmatprep.subr.bf16.mxu0 0
    %878 = vmatpush1.bf16.msra.mxu0 %v441
    %879 = vmatprep.subr.bf16.mxu0 0
    %880 = vmatpush2.bf16.msra.mxu0 %v456
    %881 = vmatprep.subr.bf16.mxu0 0
    %882 = vmatpush2.bf16.msra.mxu0 %v455
    %883 = vmatprep.subr.bf16.mxu0 0
    %884 = vmatpush2.bf16.msra.mxu0 %v454
    %885 = vmatprep.subr.bf16.mxu0 0
    %886 = vmatpush2.bf16.msra.mxu0 %v453
    %887 = vmatprep.subr.bf16.mxu0 0
    %888 = vmatpush2.bf16.msra.mxu0 %v452
    %889 = vmatprep.subr.bf16.mxu0 0
    %890 = vmatpush2.bf16.msra.mxu0 %v451
    %891 = vmatprep.subr.bf16.mxu0 0
    %892 = vmatpush2.bf16.msra.mxu0 %v450
    %893 = vmatprep.subr.bf16.mxu0 0
    %894 = vmatpush2.bf16.msra.mxu0 %v449
    %895 = vmatprep.mubr.bf16.mxu0 %v848
    %896 = vmatmul.mubr.bf16.gmra.mxu0 %v847
    %v897 = vpop.f32.mrf.mxu0
    %v898 = vadd.f32 %v208, %v897
    %v899 = vpop.f32.mrf.mxu0
    %v900 = vpop.f32.mrf.mxu0
    %v901 = vadd.f32 %v208, %v900
    %v902 = vpop.f32.mrf.mxu0
    %903 = vdwg.mxu0
    %904 = vmatprep.subr.bf16.mxu0 0
    %905 = vmatpush1.bf16.msra.mxu0 %v464
    %906 = vmatprep.subr.bf16.mxu0 0
    %907 = vmatpush1.bf16.msra.mxu0 %v463
    %908 = vmatprep.subr.bf16.mxu0 0
    %909 = vmatpush1.bf16.msra.mxu0 %v462
    %910 = vmatprep.subr.bf16.mxu0 0
    %911 = vmatpush1.bf16.msra.mxu0 %v461
    %912 = vmatprep.subr.bf16.mxu0 0
    %913 = vmatpush1.bf16.msra.mxu0 %v460
    %914 = vmatprep.subr.bf16.mxu0 0
    %915 = vmatpush1.bf16.msra.mxu0 %v459
    %916 = vmatprep.subr.bf16.mxu0 0
    %917 = vmatpush1.bf16.msra.mxu0 %v458
    %918 = vmatprep.subr.bf16.mxu0 0
    %919 = vmatpush1.bf16.msra.mxu0 %v457
    %920 = vmatprep.subr.bf16.mxu0 0
    %921 = vmatpush2.bf16.msra.mxu0 %v472
    %922 = vmatprep.subr.bf16.mxu0 0
    %923 = vmatpush2.bf16.msra.mxu0 %v471
    %924 = vmatprep.subr.bf16.mxu0 0
    %925 = vmatpush2.bf16.msra.mxu0 %v470
    %926 = vmatprep.subr.bf16.mxu0 0
    %927 = vmatpush2.bf16.msra.mxu0 %v469
    %928 = vmatprep.subr.bf16.mxu0 0
    %929 = vmatpush2.bf16.msra.mxu0 %v468
    %930 = vmatprep.subr.bf16.mxu0 0
    %931 = vmatpush2.bf16.msra.mxu0 %v467
    %932 = vmatprep.subr.bf16.mxu0 0
    %933 = vmatpush2.bf16.msra.mxu0 %v466
    %934 = vmatprep.subr.bf16.mxu0 0
    %935 = vmatpush2.bf16.msra.mxu0 %v465
    %936 = vmatprep.mubr.bf16.mxu0 %v850
    %937 = vmatmul.mubr.bf16.gmra.mxu0 %v849
    %v938 = vpop.f32.mrf.mxu0
    %v939 = vadd.f32 %v898, %v938
    %v940 = vpop.f32.mrf.mxu0
    %v941 = vpop.f32.mrf.mxu0
    %v942 = vadd.f32 %v901, %v941
    %v943 = vpop.f32.mrf.mxu0
    %944 = vdwg.mxu0
    %945 = vmatprep.subr.bf16.mxu0 0
    %946 = vmatpush1.bf16.msra.mxu0 %v480
    %947 = vmatprep.subr.bf16.mxu0 0
    %948 = vmatpush1.bf16.msra.mxu0 %v479
    %949 = vmatprep.subr.bf16.mxu0 0
    %950 = vmatpush1.bf16.msra.mxu0 %v478
    %951 = vmatprep.subr.bf16.mxu0 0
    %952 = vmatpush1.bf16.msra.mxu0 %v477
    %953 = vmatprep.subr.bf16.mxu0 0
    %954 = vmatpush1.bf16.msra.mxu0 %v476
    %955 = vmatprep.subr.bf16.mxu0 0
    %956 = vmatpush1.bf16.msra.mxu0 %v475
    %957 = vmatprep.subr.bf16.mxu0 0
    %958 = vmatpush1.bf16.msra.mxu0 %v474
    %959 = vmatprep.subr.bf16.mxu0 0
    %960 = vmatpush1.bf16.msra.mxu0 %v473
    %961 = vmatprep.subr.bf16.mxu0 0
    %962 = vmatpush2.bf16.msra.mxu0 %v488
    %963 = vmatprep.subr.bf16.mxu0 0
    %964 = vmatpush2.bf16.msra.mxu0 %v487
    %965 = vmatprep.subr.bf16.mxu0 0
    %966 = vmatpush2.bf16.msra.mxu0 %v486
    %967 = vmatprep.subr.bf16.mxu0 0
    %968 = vmatpush2.bf16.msra.mxu0 %v485
    %969 = vmatprep.subr.bf16.mxu0 0
    %970 = vmatpush2.bf16.msra.mxu0 %v484
    %971 = vmatprep.subr.bf16.mxu0 0
    %972 = vmatpush2.bf16.msra.mxu0 %v483
    %973 = vmatprep.subr.bf16.mxu0 0
    %974 = vmatpush2.bf16.msra.mxu0 %v482
    %975 = vmatprep.subr.bf16.mxu0 0
    %976 = vmatpush2.bf16.msra.mxu0 %v481
    %977 = vmatprep.mubr.bf16.mxu0 %v852
    %978 = vmatmul.mubr.bf16.gmra.mxu0 %v851
    %v979 = vpop.f32.mrf.mxu0
    %v980 = vadd.f32 %v939, %v979
    %v981 = vpop.f32.mrf.mxu0
    %v982 = vpop.f32.mrf.mxu0
    %v983 = vadd.f32 %v942, %v982
    %v984 = vpop.f32.mrf.mxu0
    %985 = vdwg.mxu0
    %986 = vmatprep.subr.bf16.mxu0 0
    %987 = vmatpush1.bf16.msra.mxu0 0
    %988 = vmatprep.subr.bf16.mxu0 0
    %989 = vmatpush1.bf16.msra.mxu0 0
    %990 = vmatprep.subr.bf16.mxu0 0
    %991 = vmatpush1.bf16.msra.mxu0 0
    %992 = vmatprep.subr.bf16.mxu0 0
    %993 = vmatpush1.bf16.msra.mxu0 0
    %994 = vmatprep.subr.bf16.mxu0 0
    %995 = vmatpush1.bf16.msra.mxu0 0
    %996 = vmatprep.subr.bf16.mxu0 0
    %997 = vmatpush1.bf16.msra.mxu0 0
    %998 = vmatprep.subr.bf16.mxu0 0
    %999 = vmatpush1.bf16.msra.mxu0 0
    %1000 = vmatprep.subr.bf16.mxu0 0
    %1001 = vmatpush1.bf16.msra.mxu0 %v489
    %1002 = vmatprep.subr.bf16.mxu0 0
    %1003 = vmatpush2.bf16.msra.mxu0 0
    %1004 = vmatprep.subr.bf16.mxu0 0
    %1005 = vmatpush2.bf16.msra.mxu0 0
    %1006 = vmatprep.subr.bf16.mxu0 0
    %1007 = vmatpush2.bf16.msra.mxu0 0
    %1008 = vmatprep.subr.bf16.mxu0 0
    %1009 = vmatpush2.bf16.msra.mxu0 0
    %1010 = vmatprep.subr.bf16.mxu0 0
    %1011 = vmatpush2.bf16.msra.mxu0 0
    %1012 = vmatprep.subr.bf16.mxu0 0
    %1013 = vmatpush2.bf16.msra.mxu0 0
    %1014 = vmatprep.subr.bf16.mxu0 0
    %1015 = vmatpush2.bf16.msra.mxu0 0
    %1016 = vmatprep.subr.bf16.mxu0 0
    %1017 = vmatpush2.bf16.msra.mxu0 0
    %1018 = vmatprep.mubr.bf16.mxu0 0
    %1019 = vmatmul.mubr.bf16.gmra.mxu0 %v861
    %v1020 = vpop.f32.mrf.mxu0
    %v1021 = vadd.f32 %v980, %v1020
    %v1022 = vpop.f32.mrf.mxu0
    %v1023 = vpop.f32.mrf.mxu0
    %v1024 = vadd.f32 %v983, %v1023
    %v1025 = vpop.f32.mrf.mxu0
    %1026 = vdwg.mxu0
    %v1027 = vmax.f32 %v1021, 0.0
    %v1028 = vmax.f32 %v1024, 0.0
    %v1029 = vpack.c.bf16 %v1028, %v1027
    %1030 = vmatprep.subr.bf16.mxu0 0
    %1031 = vmatpush1.bf16.msra.mxu0 %v755
    %1032 = vmatprep.subr.bf16.mxu0 0
    %1033 = vmatpush1.bf16.msra.mxu0 %v754
    %1034 = vmatprep.subr.bf16.mxu0 0
    %1035 = vmatpush1.bf16.msra.mxu0 %v753
    %1036 = vmatprep.subr.bf16.mxu0 0
    %1037 = vmatpush1.bf16.msra.mxu0 %v752
    %1038 = vmatprep.subr.bf16.mxu0 0
    %1039 = vmatpush1.bf16.msra.mxu0 %v751
    %1040 = vmatprep.subr.bf16.mxu0 0
    %1041 = vmatpush1.bf16.msra.mxu0 %v750
    %1042 = vmatprep.subr.bf16.mxu0 0
    %1043 = vmatpush1.bf16.msra.mxu0 %v749
    %1044 = vmatprep.subr.bf16.mxu0 0
    %1045 = vmatpush1.bf16.msra.mxu0 %v748
    %1046 = vmatprep.subr.bf16.mxu0 0
    %1047 = vmatpush2.bf16.msra.mxu0 0
    %1048 = vmatprep.subr.bf16.mxu0 0
    %1049 = vmatpush2.bf16.msra.mxu0 0
    %1050 = vmatprep.subr.bf16.mxu0 0
    %1051 = vmatpush2.bf16.msra.mxu0 0
    %1052 = vmatprep.subr.bf16.mxu0 0
    %1053 = vmatpush2.bf16.msra.mxu0 0
    %1054 = vmatprep.subr.bf16.mxu0 0
    %1055 = vmatpush2.bf16.msra.mxu0 0
    %1056 = vmatprep.subr.bf16.mxu0 0
    %1057 = vmatpush2.bf16.msra.mxu0 0
    %1058 = vmatprep.subr.bf16.mxu0 0
    %1059 = vmatpush2.bf16.msra.mxu0 0
    %1060 = vmatprep.subr.bf16.mxu0 0
    %1061 = vmatpush2.bf16.msra.mxu0 0
    %1062 = vmatprep.mubr.bf16.mxu0 0
    %1063 = vmatmul.mubr.bf16.gmra.mxu0 %v1029
    %v1064 = vpop.f32.mrf.mxu0
    %v1065 = vadd.f32 %v714, %v1064
    %v1066 = vpop.f32.mrf.mxu0
    %v1067 = vpop.f32.mrf.mxu0
    %v1068 = vadd.f32 %v714, %v1067
    %v1069 = vpop.f32.mrf.mxu0
    %1070 = vdwg.mxu0
    %v1071 = vmax.f32 %v1065, 0.0
    %v1072 = vmax.f32 %v1068, 0.0
    %v1073 = vpack.c.bf16 %v1072, %v1071
    %v1075 = vunpack.c.l.b16 %v1073
    %v1076 = vunpack.c.h.b16 %v1073
    %v1077 = vpack.c.b16 %v1075, %v1075
    %v1078 = vpack.c.b16 %v1076, %v1076
    %s1081 = scalar_lea.vmem [#allocation10], 8
    %1082 = vst [vmem:[%s1081] sm:$0xf] %v1077
    %1083 = vst [vmem:[%s1081 + $0x4] sm:$0xf] %v1078
    // Predicated region
    $region42: #{tpu_custom_call.1} parent=1 // pred_check
      _
    $region43: #{tpu_custom_call.1} parent=1 // pred_check_branch
      %1085 = sbr.rel (0) target = $region45
    $region44: #{tpu_custom_call.1} parent=1 // pred_region
      %s1087 = ssub.s32 256, 256
      %1088 = vsyncadd [#allocation4], %s1087
      %s1089 = sshll.u32 [#allocation10], 4
      %s1090 = int_to_ptr.vmem [resolvable:$true] %s1089
      %1095 = dma.vmem_to_hbm [thread:$0]  %s1090, 256, %s6, [#allocation4], 64, 64, 4
    $region45: #{tpu_custom_call.1} parent=1 // pred_fallthru
      _
    // Predicated region
    $region46: #{tpu_custom_call.1} parent=1 // pred_check
      _
    $region47: #{tpu_custom_call.1} parent=1 // pred_check_branch
      %1097 = sbr.rel (0) target = $region49
    $region48: #{tpu_custom_call.1} parent=1 // pred_region
      %1098 = dma.done [#allocation4], 256
    $region49: #{tpu_custom_call.1} parent=1 // pred_fallthru
      _
    %1099 = vsyncpa [#allocation3], 1
    %1100 = vsyncpa [#allocation6], 1
    %1101 = vsyncpa [#allocation9], 1
    %1102 = vsyncpa [#allocation4], 1

</llo_original>
